<compile_context>
chip_gen: v7x
topology: tpu7x:2x2x1
jax: 0.10.0
libtpu: 0.0.40
codegen_flags: <defaults>
</compile_context>

<pallas_src>
import jax
import jax.numpy as jnp
from jax.experimental import pallas as pl
from jax.experimental.pallas import tpu as pltpu

# Problem sizes (cartpole: 4 states, 1 control, small latent, small hidden).
D_Z = 3      # latent dim (params.d_z)
D_U = 1      # control dim
D_X = 4      # cartpole state dim
HID = 32     # hidden width of the MLPs
BATCH = 8
BATCH_LARGE = 512   # exercises the batch grid / parallel path
BATCH_ODD = 260     # exercises row padding + adaptive tb

_LANES = 128
assert HID <= _LANES and D_Z <= _LANES and D_Z + D_U <= _LANES


def _round_up(x, m):
    return (x + m - 1) // m * m


def _cdiv(a, b):
    return -(-a // b)


# --- f32 "vector" block row layout: (8, 128), lane-padded with exact zeros ----
_ROW_WD1 = 0                       # rows 0..D_Z-1 : wd1 (one row per latent dim)
_ROW_BD1 = D_Z                     # bd1
_ROW_WF1U = D_Z + 1                # rows for wf1u (one per control dim)
_ROW_BA = D_Z + 1 + D_U            # b_a = bd2 @ wf1x + bf1
_ROW_BB = _ROW_BA + 1              # b_b = bf2 @ we1 + be1
_ROW_BE2 = _ROW_BB + 1             # be2
_VEC_ROWS = _round_up(_ROW_BE2 + 1, 8)     # = 8 for (d_z=3, d_u=1)

# --- bf16 weight slab row layout: (3*HID, 128) --------------------------------
_W_A_ROW = 0                       # W_a = wd2 @ wf1x   (HID, 128), cols >= HID zero
_W_B_ROW = HID                     # W_b = wf2 @ we1    (HID, 128), cols >= HID zero
_W_O_ROW = 2 * HID                 # we2                (HID, 128), cols >= D_Z zero
_W_ROWS = 3 * HID                  # 96

_TB_MAX = 2048   # max batch rows per grid step (VMEM use stays < 1 MiB)


def _tensorcores_per_chip():
    """Best-effort TensorCore count per chip (2 on v7x, else 1)."""
    try:
        kind = jax.devices()[0].device_kind.lower()
    except Exception:
        return 1
    return 2 if ("v7" in kind or "tpu7" in kind) else 1


def _choose_tb(b):
    """Rows per grid step: 1 block per TensorCore, capped at _TB_MAX, adaptive."""
    b8 = _round_up(max(b, 1), 8)
    ncores = _tensorcores_per_chip()
    nblk = ncores if (ncores > 1 and b8 > 16) else 1
    nblk = max(nblk, _cdiv(b8, _TB_MAX))
    return _round_up(_cdiv(b8, nblk), 8)


def _reverse_ae_dynamics_kernel(zu_ref, vec_ref, w_ref, out_ref):
    f32 = jnp.float32
    bf16 = jnp.bfloat16
    zu = zu_ref[...]                                        # (tb, d_z + d_u) f32
    vec = vec_ref[...]                                      # (8, 128) f32

    w_a = w_ref[_W_A_ROW:_W_A_ROW + HID, :]                 # (HID, 128) bf16
    w_b = w_ref[_W_B_ROW:_W_B_ROW + HID, :]                 # (HID, 128) bf16
    w_o = w_ref[_W_O_ROW:_W_O_ROW + HID, :]                 # (HID, 128) bf16

    # --- ae.decode layer 1: K = d_z -> VPU broadcast FMAs (f32) ---------------
    pre = vec[_ROW_BD1:_ROW_BD1 + 1, :]                     # bd1, broadcast rows
    for k in range(D_Z):                                    # static unroll
        pre = pre + zu[:, k:k + 1] * vec[_ROW_WD1 + k:_ROW_WD1 + k + 1, :]
    h = jnp.tanh(pre)                                       # (tb, 128); lanes >= HID are 0

    # --- fused (decode L2 o dynamics L1): h @ (wd2@wf1x) + u (x) wf1u + b_a ---
    pre = jnp.dot(h[:, :HID].astype(bf16), w_a,
                  preferred_element_type=f32) + vec[_ROW_BA:_ROW_BA + 1, :]
    for k in range(D_U):                                    # K = d_u -> VPU outer product
        pre = pre + zu[:, D_Z + k:D_Z + k + 1] * vec[_ROW_WF1U + k:_ROW_WF1U + k + 1, :]
    h = jnp.tanh(pre)

    # --- fused (dynamics L2 o encode L1): h @ (wf2@we1) + b_b ------------------
    h = jnp.tanh(jnp.dot(h[:, :HID].astype(bf16), w_b,
                         preferred_element_type=f32) + vec[_ROW_BB:_ROW_BB + 1, :])

    # --- ae.encode layer 2; store only the d_z real lanes ----------------------
    out = jnp.dot(h[:, :HID].astype(bf16), w_o,
                  preferred_element_type=f32) + vec[_ROW_BE2:_ROW_BE2 + 1, :]
    out_ref[...] = out[:, :D_Z].astype(out_ref.dtype)


def pack_params(p):
    """Fold the two linear->linear boundaries (in f32, HIGHEST precision) and
    pack parameters into a tiny f32 per-row block + a bf16 weight slab."""
    hi = jax.lax.Precision.HIGHEST
    sg = jax.lax.stop_gradient          # dynamics is frozen in the PyTorch module
    wf1x, wf1u, bf1 = sg(p["wf1x"]), sg(p["wf1u"]), sg(p["bf1"])
    wf2, bf2 = sg(p["wf2"]), sg(p["bf2"])

    w_a = jnp.dot(p["wd2"], wf1x, precision=hi)             # (HID, HID)
    b_a = jnp.dot(p["bd2"], wf1x, precision=hi) + bf1       # (1, HID)
    w_b = jnp.dot(wf2, p["we1"], precision=hi)              # (HID, HID)
    b_b = jnp.dot(bf2, p["we1"], precision=hi) + p["be1"]   # (1, HID)

    def pad_lanes(a):
        a = jnp.asarray(a, jnp.float32)
        return jnp.pad(a, ((0, 0), (0, _LANES - a.shape[1])))

    vec = jnp.concatenate([
        pad_lanes(p["wd1"]),        # rows 0..D_Z-1
        pad_lanes(p["bd1"]),        # bd1
        pad_lanes(wf1u),            # wf1u rows
        pad_lanes(b_a),             # b_a
        pad_lanes(b_b),             # b_b
        pad_lanes(p["be2"]),        # be2
    ], axis=0)
    vec = jnp.pad(vec, ((0, _VEC_ROWS - vec.shape[0]), (0, 0)))
    assert vec.shape == (_VEC_ROWS, _LANES)

    wslab = jnp.concatenate([
        pad_lanes(w_a),             # (HID, 128)
        pad_lanes(w_b),             # (HID, 128)
        pad_lanes(p["we2"]),        # (HID, 128); real block is (HID, D_Z)
    ], axis=0).astype(jnp.bfloat16)
    assert wslab.shape == (_W_ROWS, _LANES)
    return vec, wslab


@jax.jit
def reverse_ae_dynamics(zu, vec, wslab):
    """JAX/Pallas equivalent of ReverseAEDynamics.forward (forward pass)."""
    squeeze = zu.ndim == 1
    if squeeze:
        zu = zu[None, :]
    b = zu.shape[0]

    tb = _choose_tb(b)
    bpad = _round_up(b, tb)
    if bpad != b:
        zu = jnp.pad(zu, ((0, bpad - b), (0, 0)))
    grid = (bpad // tb,)

    out = pl.pallas_call(
        _reverse_ae_dynamics_kernel,
        out_shape=jax.ShapeDtypeStruct((bpad, D_Z), jnp.float32),
        grid_spec=pltpu.PrefetchScalarGridSpec(
            num_scalar_prefetch=0,
            grid=grid,
            in_specs=[
                pl.BlockSpec((tb, D_Z + D_U), lambda i: (i, 0)),        # activations
                pl.BlockSpec((_VEC_ROWS, _LANES), lambda i: (0, 0)),    # f32 row params
                pl.BlockSpec((_W_ROWS, _LANES), lambda i: (0, 0)),      # bf16 weights
            ],
            out_specs=pl.BlockSpec((tb, D_Z), lambda i: (i, 0)),
        ),
        compiler_params=pltpu.CompilerParams(
            dimension_semantics=("parallel",)),   # v7x: shard batch over 2 TCs
    )(zu, vec, wslab)

    if bpad != b:
        out = out[:b]
    return out[0] if squeeze else out


def _reference(zu, p):
    """Pure-JAX f32 reference using the ORIGINAL (unfused, unquantized) params."""
    if zu.ndim == 1:
        zu = zu[None, :]
        squeeze = True
    else:
        squeeze = False
    z, u = zu[:, :D_Z], zu[:, D_Z:]
    x = jnp.tanh(z @ p["wd1"] + p["bd1"]) @ p["wd2"] + p["bd2"]
    h = jnp.tanh(x @ p["wf1x"] + u @ p["wf1u"] + p["bf1"])
    x_next = h @ p["wf2"] + p["bf2"]
    z_next = jnp.tanh(x_next @ p["we1"] + p["be1"]) @ p["we2"] + p["be2"]
    return z_next[0] if squeeze else z_next


def _init_params(key):
    ks = jax.random.split(key, 12)

    def w(k, shape, scale=0.3):
        return scale * jax.random.normal(k, shape, dtype=jnp.float32)

    return {
        # ae.decode: d_z -> H -> d_x
        "wd1": w(ks[0], (D_Z, HID)), "bd1": w(ks[1], (1, HID), 0.05),
        "wd2": w(ks[2], (HID, D_X)), "bd2": w(ks[3], (1, D_X), 0.05),
        # dynamics: (d_x | d_u) -> H -> d_x   (input weight pre-split x / u)
        "wf1x": w(ks[4], (D_X, HID)), "wf1u": w(ks[5], (D_U, HID)),
        "bf1": w(ks[6], (1, HID), 0.05),
        "wf2": w(ks[7], (HID, D_X)), "bf2": w(ks[8], (1, D_X), 0.05),
        # ae.encode: d_x -> H -> d_z
        "we1": w(ks[9], (D_X, HID)), "be1": jnp.zeros((1, HID), jnp.float32),
        "we2": w(ks[10], (HID, D_Z)), "be2": jnp.zeros((1, D_Z), jnp.float32),
    }


if __name__ == "__main__":
    key = jax.random.PRNGKey(0)
    pkey, xkey, xkey2, xkey3 = jax.random.split(key, 4)
    params = _init_params(pkey)
    vec, wslab = jax.block_until_ready(pack_params(params))   # one-time fold + pack

    # bf16 weight quantization (accumulation stays f32, activations tanh-bounded)
    # gives ~1e-3..1e-2 absolute deviation vs. the pure-f32 reference; 2e-2 is a
    # comfortably safe bound that still catches any structural bug.
    ATOL = RTOL = 2e-2

    # 2-D (batched) input: (batch, d_z + d_u)
    zu = jax.random.normal(xkey, (BATCH, D_Z + D_U), dtype=jnp.float32)
    out = jax.block_until_ready(reverse_ae_dynamics(zu, vec, wslab))
    ref = _reference(zu, params)
    assert out.shape == (BATCH, D_Z)
    assert jnp.allclose(out, ref, atol=ATOL, rtol=RTOL), float(jnp.max(jnp.abs(out - ref)))

    # 1-D (single sample) path of the PyTorch forward.
    zu1 = zu[0]
    out1 = jax.block_until_ready(reverse_ae_dynamics(zu1, vec, wslab))
    assert out1.shape == (D_Z,)
    assert jnp.allclose(out1, _reference(zu1, params), atol=ATOL, rtol=RTOL)

    # Large batch: one big block on single-TC chips, 2 balanced blocks on v7x.
    zub = jax.random.normal(xkey2, (BATCH_LARGE, D_Z + D_U), dtype=jnp.float32)
    outb = jax.block_until_ready(reverse_ae_dynamics(zub, vec, wslab))
    assert outb.shape == (BATCH_LARGE, D_Z)
    refb = _reference(zub, params)
    assert jnp.allclose(outb, refb, atol=ATOL, rtol=RTOL), float(jnp.max(jnp.abs(outb - refb)))

    # Odd batch: exercises row padding + adaptive block sizing.
    zuo = jax.random.normal(xkey3, (BATCH_ODD, D_Z + D_U), dtype=jnp.float32)
    outo = jax.block_until_ready(reverse_ae_dynamics(zuo, vec, wslab))
    assert outo.shape == (BATCH_ODD, D_Z)
    refo = _reference(zuo, params)
    assert jnp.allclose(outo, refo, atol=ATOL, rtol=RTOL), float(jnp.max(jnp.abs(outo - refo)))

    print("KERNEL_OK")
</pallas_src>

<mosaic_0001>
module attributes {stable_mosaic.version = 11 : i64} {
  func.func @_reverse_ae_dynamics_kernel(%arg0: i32, %arg1: memref<8x4xf32, #tpu.memory_space<vmem>>, %arg2: memref<8x128xf32, #tpu.memory_space<vmem>>, %arg3: memref<96x128xbf16, #tpu.memory_space<vmem>>, %arg4: memref<8x3xf32, #tpu.memory_space<vmem>>) attributes {dimension_semantics = [#tpu.dimension_semantics<parallel>], iteration_bounds = array<i64: 1>, scalar_prefetch = 0 : i64, scratch_operands = 0 : i64, tpu.core_type = #tpu.core_type<tc>, window_params = [{transform_indices = @transform_0, window_bounds = array<i64: 8, 4>}, {pipeline_mode = #tpu.pipeline_mode<synchronous>, transform_indices = @transform_1, window_bounds = array<i64: 8, 128>}, {pipeline_mode = #tpu.pipeline_mode<synchronous>, transform_indices = @transform_2, window_bounds = array<i64: 96, 128>}, {transform_indices = @transform_3, window_bounds = array<i64: 8, 3>}]} {
    %c0 = arith.constant 0 : index
    %c0_0 = arith.constant 0 : index
    %0 = vector.load %arg1[%c0, %c0_0] : memref<8x4xf32, #tpu.memory_space<vmem>>, vector<8x4xf32>
    %c0_1 = arith.constant 0 : index
    %c0_2 = arith.constant 0 : index
    %1 = vector.load %arg2[%c0_1, %c0_2] : memref<8x128xf32, #tpu.memory_space<vmem>>, vector<8x128xf32>
    %c0_3 = arith.constant 0 : index
    %c0_4 = arith.constant 0 : index
    %2 = vector.load %arg3[%c0_3, %c0_4] : memref<96x128xbf16, #tpu.memory_space<vmem>>, vector<32x128xbf16>
    %c32 = arith.constant 32 : index
    %c0_5 = arith.constant 0 : index
    %3 = vector.load %arg3[%c32, %c0_5] : memref<96x128xbf16, #tpu.memory_space<vmem>>, vector<32x128xbf16>
    %c64 = arith.constant 64 : index
    %c0_6 = arith.constant 0 : index
    %4 = vector.load %arg3[%c64, %c0_6] : memref<96x128xbf16, #tpu.memory_space<vmem>>, vector<32x128xbf16>
    %5 = vector.extract_strided_slice %1 {offsets = [3, 0], sizes = [1, 128], strides = [1, 1]} : vector<8x128xf32> to vector<1x128xf32>
    %6 = vector.extract_strided_slice %0 {offsets = [0, 0], sizes = [8, 1], strides = [1, 1]} : vector<8x4xf32> to vector<8x1xf32>
    %7 = vector.extract_strided_slice %1 {offsets = [0, 0], sizes = [1, 128], strides = [1, 1]} : vector<8x128xf32> to vector<1x128xf32>
    %8 = vector.broadcast %6 : vector<8x1xf32> to vector<8x128xf32>
    %9 = vector.broadcast %7 : vector<1x128xf32> to vector<8x128xf32>
    %10 = arith.mulf %8, %9 : vector<8x128xf32>
    %11 = vector.broadcast %5 : vector<1x128xf32> to vector<8x128xf32>
    %12 = arith.addf %11, %10 : vector<8x128xf32>
    %13 = vector.extract_strided_slice %0 {offsets = [0, 1], sizes = [8, 1], strides = [1, 1]} : vector<8x4xf32> to vector<8x1xf32>
    %14 = vector.extract_strided_slice %1 {offsets = [1, 0], sizes = [1, 128], strides = [1, 1]} : vector<8x128xf32> to vector<1x128xf32>
    %15 = vector.broadcast %13 : vector<8x1xf32> to vector<8x128xf32>
    %16 = vector.broadcast %14 : vector<1x128xf32> to vector<8x128xf32>
    %17 = arith.mulf %15, %16 : vector<8x128xf32>
    %18 = arith.addf %12, %17 : vector<8x128xf32>
    %19 = vector.extract_strided_slice %0 {offsets = [0, 2], sizes = [8, 1], strides = [1, 1]} : vector<8x4xf32> to vector<8x1xf32>
    %20 = vector.extract_strided_slice %1 {offsets = [2, 0], sizes = [1, 128], strides = [1, 1]} : vector<8x128xf32> to vector<1x128xf32>
    %21 = vector.broadcast %19 : vector<8x1xf32> to vector<8x128xf32>
    %22 = vector.broadcast %20 : vector<1x128xf32> to vector<8x128xf32>
    %23 = arith.mulf %21, %22 : vector<8x128xf32>
    %24 = arith.addf %18, %23 : vector<8x128xf32>
    %25 = math.tanh %24 : vector<8x128xf32>
    %26 = vector.extract_strided_slice %25 {offsets = [0, 0], sizes = [8, 32], strides = [1, 1]} : vector<8x128xf32> to vector<8x32xf32>
    %27 = arith.truncf %26 : vector<8x32xf32> to vector<8x32xbf16>
    %cst = arith.constant dense<0.000000e+00> : vector<8x128xf32>
    %28 = tpu.matmul %27, %2, %cst {dimension_numbers = #tpu.dot_dimension_numbers<[1], [0], [0], [1], [0, 0, 1, 1], [], []>} : vector<8x32xbf16>, vector<32x128xbf16>, vector<8x128xf32> -> vector<8x128xf32>
    %29 = vector.extract_strided_slice %1 {offsets = [5, 0], sizes = [1, 128], strides = [1, 1]} : vector<8x128xf32> to vector<1x128xf32>
    %30 = vector.broadcast %29 : vector<1x128xf32> to vector<8x128xf32>
    %31 = arith.addf %28, %30 : vector<8x128xf32>
    %32 = vector.extract_strided_slice %0 {offsets = [0, 3], sizes = [8, 1], strides = [1, 1]} : vector<8x4xf32> to vector<8x1xf32>
    %33 = vector.extract_strided_slice %1 {offsets = [4, 0], sizes = [1, 128], strides = [1, 1]} : vector<8x128xf32> to vector<1x128xf32>
    %34 = vector.broadcast %32 : vector<8x1xf32> to vector<8x128xf32>
    %35 = vector.broadcast %33 : vector<1x128xf32> to vector<8x128xf32>
    %36 = arith.mulf %34, %35 : vector<8x128xf32>
    %37 = arith.addf %31, %36 : vector<8x128xf32>
    %38 = math.tanh %37 : vector<8x128xf32>
    %39 = vector.extract_strided_slice %38 {offsets = [0, 0], sizes = [8, 32], strides = [1, 1]} : vector<8x128xf32> to vector<8x32xf32>
    %40 = arith.truncf %39 : vector<8x32xf32> to vector<8x32xbf16>
    %cst_7 = arith.constant dense<0.000000e+00> : vector<8x128xf32>
    %41 = tpu.matmul %40, %3, %cst_7 {dimension_numbers = #tpu.dot_dimension_numbers<[1], [0], [0], [1], [0, 0, 1, 1], [], []>} : vector<8x32xbf16>, vector<32x128xbf16>, vector<8x128xf32> -> vector<8x128xf32>
    %42 = vector.extract_strided_slice %1 {offsets = [6, 0], sizes = [1, 128], strides = [1, 1]} : vector<8x128xf32> to vector<1x128xf32>
    %43 = vector.broadcast %42 : vector<1x128xf32> to vector<8x128xf32>
    %44 = arith.addf %41, %43 : vector<8x128xf32>
    %45 = math.tanh %44 : vector<8x128xf32>
    %46 = vector.extract_strided_slice %45 {offsets = [0, 0], sizes = [8, 32], strides = [1, 1]} : vector<8x128xf32> to vector<8x32xf32>
    %47 = arith.truncf %46 : vector<8x32xf32> to vector<8x32xbf16>
    %cst_8 = arith.constant dense<0.000000e+00> : vector<8x128xf32>
    %48 = tpu.matmul %47, %4, %cst_8 {dimension_numbers = #tpu.dot_dimension_numbers<[1], [0], [0], [1], [0, 0, 1, 1], [], []>} : vector<8x32xbf16>, vector<32x128xbf16>, vector<8x128xf32> -> vector<8x128xf32>
    %49 = vector.extract_strided_slice %1 {offsets = [7, 0], sizes = [1, 128], strides = [1, 1]} : vector<8x128xf32> to vector<1x128xf32>
    %50 = vector.broadcast %49 : vector<1x128xf32> to vector<8x128xf32>
    %51 = arith.addf %48, %50 : vector<8x128xf32>
    %52 = vector.extract_strided_slice %51 {offsets = [0, 0], sizes = [8, 3], strides = [1, 1]} : vector<8x128xf32> to vector<8x3xf32>
    %c0_9 = arith.constant 0 : index
    %c0_10 = arith.constant 0 : index
    %53 = vector.load %arg4[%c0_9, %c0_10] : memref<8x3xf32, #tpu.memory_space<vmem>>, vector<8x3xf32>
    tpu.vector_store %arg4[%c0_9, %c0_10], %52 {strides = array<i32>} : memref<8x3xf32, #tpu.memory_space<vmem>>, vector<8x3xf32>,
    return
  }
  func.func @transform_0(%arg0: i32) -> (i32, i32) {
    %c0_i32 = arith.constant 0 : i32
    %c0_i32_0 = arith.constant 0 : i32
    return %arg0, %c0_i32 : i32, i32
  }
  func.func @transform_1(%arg0: i32) -> (i32, i32) {
    %c0_i32 = arith.constant 0 : i32
    %c0_i32_0 = arith.constant 0 : i32
    %c0_i32_1 = arith.constant 0 : i32
    return %c0_i32, %c0_i32_0 : i32, i32
  }
  func.func @transform_2(%arg0: i32) -> (i32, i32) {
    %c0_i32 = arith.constant 0 : i32
    %c0_i32_0 = arith.constant 0 : i32
    %c0_i32_1 = arith.constant 0 : i32
    return %c0_i32, %c0_i32_0 : i32, i32
  }
  func.func @transform_3(%arg0: i32) -> (i32, i32) {
    %c0_i32 = arith.constant 0 : i32
    %c0_i32_0 = arith.constant 0 : i32
    return %arg0, %c0_i32 : i32, i32
  }
}

</mosaic_0001>

<llo_original>
// kernel: reverse_ae_dynamics.1
$region0: #{reverse_ae_dynamics.1}
  #allocation0 [shape = 'u32[]', space=smem, size = 0x4, offset = 0x4, fixed_abs, tag = 'smem constant byte address 0x4 - core index']
  #allocation1 [shape = 'u32[144,128]{1,0:T(1,128)}', space=vmem, size = 0x12000, scoped, tag = 'internal scratch']
  %s0 = inlined_call_operand.vmem [shape: f32[8,4], index: 0, kind: input, shape index: {}]
  %s1 = inlined_call_operand.vmem [shape: f32[8,128], index: 1, kind: input, shape index: {}]
  %s2 = inlined_call_operand.hbm [shape: bf16[96,128], index: 2, kind: input, shape index: {}]
  %s3 = inlined_call_operand.vmem [shape: f32[8,3], index: 3, kind: output, shape index: {}]
  %s4 = sld [smem:[#allocation0]]
  $region26: #{reverse_ae_dynamics.1} parent=0
    _
  %s6 = ssub.s32 1, %s4
  %s7 = scalar_select 0, %s6, %s4
  $region1: #{reverse_ae_dynamics.1} parent=0
    #allocation2 [shape = 'u8[24576]{0}', space=vmem, size = 0x6000, scoped, tag = 'input window, operand 2, single buffered']
    #allocation3 [shape = 's32[1]{0}', space=sflag, size = 0x4, scoped, tag = 'scoped memory for reverse_ae_dynamics.1']
    %8 = vsyncpa [#allocation3], 0
    // Predicated region
    $region2: #{reverse_ae_dynamics.1} parent=1 // pred_check
      _
    $region3: #{reverse_ae_dynamics.1} parent=1 // pred_check_branch
      %10 = sbr.rel (0) target = $region5
    $region4: #{reverse_ae_dynamics.1} parent=1 // pred_region
      _
    $region5: #{reverse_ae_dynamics.1} parent=1 // pred_fallthru
      _
    // Predicated region
    $region6: #{reverse_ae_dynamics.1} parent=1 // pred_check
      _
    $region7: #{reverse_ae_dynamics.1} parent=1 // pred_check_branch
      %12 = sbr.rel (0) target = $region9
    $region8: #{reverse_ae_dynamics.1} parent=1 // pred_region
      _
    $region9: #{reverse_ae_dynamics.1} parent=1 // pred_fallthru
      _
    // Predicated region
    $region10: #{reverse_ae_dynamics.1} parent=1 // pred_check
      _
    $region11: #{reverse_ae_dynamics.1} parent=1 // pred_check_branch
      %14 = sbr.rel (0) target = $region13
    $region12: #{reverse_ae_dynamics.1} parent=1 // pred_region
      %s16 = ssub.s32 768, 768
      %17 = vsyncadd [#allocation3], %s16
      %s18 = sshll.u32 [#allocation2], 4
      %s19 = int_to_ptr.vmem [resolvable:$true] %s18
      %24 = dma.hbm_to_vmem [thread:$0]  %s2, 768, %s19, [#allocation3], 64, 64, 4
    $region13: #{reverse_ae_dynamics.1} parent=1 // pred_fallthru
      _
    // Predicated region
    $region14: #{reverse_ae_dynamics.1} parent=1 // pred_check
      _
    $region15: #{reverse_ae_dynamics.1} parent=1 // pred_check_branch
      %26 = sbr.rel (0) target = $region17
    $region16: #{reverse_ae_dynamics.1} parent=1 // pred_region
      %27 = dma.done [#allocation3], 768
    $region17: #{reverse_ae_dynamics.1} parent=1 // pred_fallthru
      _
    %v29 = vld [vmem:[%s0] sm:$0xff]
    %v30 = vld [vmem:[%s1] sm:$0xff]
    %v31 = vld [vmem:[#allocation2] sm:$0xf]
    %v32 = vld [vmem:[#allocation2 + $0x4] sm:$0xf]
    %v33 = vld [vmem:[#allocation2 + $0x8] sm:$0xf]
    %v34 = vld [vmem:[#allocation2 + $0xc] sm:$0xf]
    %v35 = vld [vmem:[#allocation2 + $0x10] sm:$0xf]
    %v36 = vld [vmem:[#allocation2 + $0x14] sm:$0xf]
    %v37 = vld [vmem:[#allocation2 + $0x18] sm:$0xf]
    %v38 = vld [vmem:[#allocation2 + $0x1c] sm:$0xf]
    %v39 = vld [vmem:[#allocation2 + $0x20] sm:$0xf]
    %v40 = vld [vmem:[#allocation2 + $0x24] sm:$0xf]
    %v41 = vld [vmem:[#allocation2 + $0x28] sm:$0xf]
    %v42 = vld [vmem:[#allocation2 + $0x2c] sm:$0xf]
    %44 = vset.pattern.permute.xlu0 0
    %45 = vperm.xlu0 %44, %v29
    %v46 = vpop.permute.xlu0 %45
    %v48 = vlaneseq
    %v49 = vshrl.u32 %v48, 7
    %v50 = vsub.s32 0, %v49
    %v51 = vrot.slane %v30, %v50
    %v52 = vmul.f32 %v46, %v51
    %v53 = vlaneseq
    %v54 = vshrl.u32 %v53, 7
    %v55 = vsub.s32 3, %v54
    %v56 = vrot.slane %v30, %v55
    %v57 = vadd.f32 %v56, %v52
    %58 = vset.pattern.permute.xlu0 1
    %59 = vperm.xlu0 %58, %v29
    %v60 = vpop.permute.xlu0 %59
    %v62 = vlaneseq
    %v63 = vshrl.u32 %v62, 7
    %v64 = vsub.s32 1, %v63
    %v65 = vrot.slane %v30, %v64
    %v66 = vmul.f32 %v60, %v65
    %v67 = vadd.f32 %v57, %v66
    %68 = vset.pattern.permute.xlu0 2
    %69 = vperm.xlu0 %68, %v29
    %v70 = vpop.permute.xlu0 %69
    %v72 = vlaneseq
    %v73 = vshrl.u32 %v72, 7
    %v74 = vsub.s32 2, %v73
    %v75 = vrot.slane %v30, %v74
    %v76 = vmul.f32 %v70, %v75
    %v77 = vadd.f32 %v67, %v76
    %v78 = vtanh.pop %v77
    %v79 = vpack.c.bf16 %v78, %v78
    %v80 = vlaneseq
    %v81 = vshrl.u32 %v80, 7
    %v82 = vsub.s32 5, %v81
    %v83 = vrot.slane %v30, %v82
    %v88 = vunpack.c.l.b16 %v31
    %v89 = vunpack.c.l.b16 %v32
    %v90 = vunpack.c.l.b16 %v33
    %v91 = vunpack.c.l.b16 %v34
    %v92 = vpack.c.b16 %v89, %v88
    %v93 = vpack.c.b16 %v91, %v90
    %vm96 = vcmask 261120
    %v98 = vsel %vm96, %v79, 0
    %100 = vmatprep.subr.bf16.mxu0 0
    %101 = vmatpush1.bf16.msra.mxu0 %v92
    %102 = vmatprep.subr.bf16.mxu0 0
    %103 = vmatpush1.bf16.msra.mxu0 %v93
    %104 = vmatprep.subr.bf16.mxu0 0
    %105 = vmatpush1.bf16.msra.mxu0 0
    %106 = vmatprep.subr.bf16.mxu0 0
    %107 = vmatpush1.bf16.msra.mxu0 0
    %108 = vmatprep.subr.bf16.mxu0 0
    %109 = vmatpush1.bf16.msra.mxu0 0
    %110 = vmatprep.subr.bf16.mxu0 0
    %111 = vmatpush1.bf16.msra.mxu0 0
    %112 = vmatprep.subr.bf16.mxu0 0
    %113 = vmatpush1.bf16.msra.mxu0 0
    %114 = vmatprep.subr.bf16.mxu0 0
    %115 = vmatpush1.bf16.msra.mxu0 0
    %116 = vmatprep.subr.bf16.mxu0 0
    %117 = vmatpush1.bf16.msra.mxu0 0
    %118 = vmatprep.subr.bf16.mxu0 0
    %119 = vmatpush1.bf16.msra.mxu0 0
    %120 = vmatprep.subr.bf16.mxu0 0
    %121 = vmatpush1.bf16.msra.mxu0 0
    %122 = vmatprep.subr.bf16.mxu0 0
    %123 = vmatpush1.bf16.msra.mxu0 0
    %124 = vmatprep.subr.bf16.mxu0 0
    %125 = vmatpush1.bf16.msra.mxu0 0
    %126 = vmatprep.subr.bf16.mxu0 0
    %127 = vmatpush1.bf16.msra.mxu0 0
    %128 = vmatprep.subr.bf16.mxu0 0
    %129 = vmatpush1.bf16.msra.mxu0 0
    %130 = vmatprep.subr.bf16.mxu0 0
    %131 = vmatpush1.bf16.msra.mxu0 0
    %132 = vmatprep.mubr.bf16.mxu0 0
    %133 = vmatmul.mubr.bf16.gmra.mrb[0].mxu0 %v98
    %v134 = vpop.f32.mrb[0].mxu0
    %v135 = vadd.f32 %v83, %v134
    %v136 = vpop.f32.mrb[0].mxu0
    %v137 = vpop.f32.mrb[0].mxu0
    %v138 = vpop.f32.mrb[0].mxu0
    %139 = vdwg.mxu0
    %140 = vset.pattern.permute.xlu0 3
    %141 = vperm.xlu0 %140, %v29
    %v142 = vpop.permute.xlu0 %141
    %v144 = vlaneseq
    %v145 = vshrl.u32 %v144, 7
    %v146 = vsub.s32 4, %v145
    %v147 = vrot.slane %v30, %v146
    %v148 = vmul.f32 %v142, %v147
    %v149 = vadd.f32 %v135, %v148
    %v150 = vtanh.pop %v149
    %v151 = vpack.c.bf16 %v150, %v150
    %v152 = vlaneseq
    %v153 = vshrl.u32 %v152, 7
    %v154 = vsub.s32 6, %v153
    %v155 = vrot.slane %v30, %v154
    %v160 = vunpack.c.l.b16 %v35
    %v161 = vunpack.c.l.b16 %v36
    %v162 = vunpack.c.l.b16 %v37
    %v163 = vunpack.c.l.b16 %v38
    %v164 = vpack.c.b16 %v161, %v160
    %v165 = vpack.c.b16 %v163, %v162
    %v169 = vsel %vm96, %v151, 0
    %171 = vmatprep.subr.bf16.mxu0 0
    %172 = vmatpush1.bf16.msra.mxu0 %v164
    %173 = vmatprep.subr.bf16.mxu0 0
    %174 = vmatpush1.bf16.msra.mxu0 %v165
    %175 = vmatprep.subr.bf16.mxu0 0
    %176 = vmatpush1.bf16.msra.mxu0 0
    %177 = vmatprep.subr.bf16.mxu0 0
    %178 = vmatpush1.bf16.msra.mxu0 0
    %179 = vmatprep.subr.bf16.mxu0 0
    %180 = vmatpush1.bf16.msra.mxu0 0
    %181 = vmatprep.subr.bf16.mxu0 0
    %182 = vmatpush1.bf16.msra.mxu0 0
    %183 = vmatprep.subr.bf16.mxu0 0
    %184 = vmatpush1.bf16.msra.mxu0 0
    %185 = vmatprep.subr.bf16.mxu0 0
    %186 = vmatpush1.bf16.msra.mxu0 0
    %187 = vmatprep.subr.bf16.mxu0 0
    %188 = vmatpush1.bf16.msra.mxu0 0
    %189 = vmatprep.subr.bf16.mxu0 0
    %190 = vmatpush1.bf16.msra.mxu0 0
    %191 = vmatprep.subr.bf16.mxu0 0
    %192 = vmatpush1.bf16.msra.mxu0 0
    %193 = vmatprep.subr.bf16.mxu0 0
    %194 = vmatpush1.bf16.msra.mxu0 0
    %195 = vmatprep.subr.bf16.mxu0 0
    %196 = vmatpush1.bf16.msra.mxu0 0
    %197 = vmatprep.subr.bf16.mxu0 0
    %198 = vmatpush1.bf16.msra.mxu0 0
    %199 = vmatprep.subr.bf16.mxu0 0
    %200 = vmatpush1.bf16.msra.mxu0 0
    %201 = vmatprep.subr.bf16.mxu0 0
    %202 = vmatpush1.bf16.msra.mxu0 0
    %203 = vmatprep.mubr.bf16.mxu0 0
    %204 = vmatmul.mubr.bf16.gmra.mrb[0].mxu0 %v169
    %v205 = vpop.f32.mrb[0].mxu0
    %v206 = vadd.f32 %v155, %v205
    %v207 = vpop.f32.mrb[0].mxu0
    %v208 = vpop.f32.mrb[0].mxu0
    %v209 = vpop.f32.mrb[0].mxu0
    %210 = vdwg.mxu0
    %v211 = vtanh.pop %v206
    %v212 = vpack.c.bf16 %v211, %v211
    %v213 = vlaneseq
    %v214 = vshrl.u32 %v213, 7
    %v215 = vsub.s32 7, %v214
    %v216 = vrot.slane %v30, %v215
    %v221 = vunpack.c.l.b16 %v39
    %v222 = vunpack.c.l.b16 %v40
    %v223 = vunpack.c.l.b16 %v41
    %v224 = vunpack.c.l.b16 %v42
    %v225 = vpack.c.b16 %v222, %v221
    %v226 = vpack.c.b16 %v224, %v223
    %v230 = vsel %vm96, %v212, 0
    %232 = vmatprep.subr.bf16.mxu0 0
    %233 = vmatpush1.bf16.msra.mxu0 %v225
    %234 = vmatprep.subr.bf16.mxu0 0
    %235 = vmatpush1.bf16.msra.mxu0 %v226
    %236 = vmatprep.subr.bf16.mxu0 0
    %237 = vmatpush1.bf16.msra.mxu0 0
    %238 = vmatprep.subr.bf16.mxu0 0
    %239 = vmatpush1.bf16.msra.mxu0 0
    %240 = vmatprep.subr.bf16.mxu0 0
    %241 = vmatpush1.bf16.msra.mxu0 0
    %242 = vmatprep.subr.bf16.mxu0 0
    %243 = vmatpush1.bf16.msra.mxu0 0
    %244 = vmatprep.subr.bf16.mxu0 0
    %245 = vmatpush1.bf16.msra.mxu0 0
    %246 = vmatprep.subr.bf16.mxu0 0
    %247 = vmatpush1.bf16.msra.mxu0 0
    %248 = vmatprep.subr.bf16.mxu0 0
    %249 = vmatpush1.bf16.msra.mxu0 0
    %250 = vmatprep.subr.bf16.mxu0 0
    %251 = vmatpush1.bf16.msra.mxu0 0
    %252 = vmatprep.subr.bf16.mxu0 0
    %253 = vmatpush1.bf16.msra.mxu0 0
    %254 = vmatprep.subr.bf16.mxu0 0
    %255 = vmatpush1.bf16.msra.mxu0 0
    %256 = vmatprep.subr.bf16.mxu0 0
    %257 = vmatpush1.bf16.msra.mxu0 0
    %258 = vmatprep.subr.bf16.mxu0 0
    %259 = vmatpush1.bf16.msra.mxu0 0
    %260 = vmatprep.subr.bf16.mxu0 0
    %261 = vmatpush1.bf16.msra.mxu0 0
    %262 = vmatprep.subr.bf16.mxu0 0
    %263 = vmatpush1.bf16.msra.mxu0 0
    %264 = vmatprep.mubr.bf16.mxu0 0
    %265 = vmatmul.mubr.bf16.gmra.mrb[0].mxu0 %v230
    %v266 = vpop.f32.mrb[0].mxu0
    %v267 = vadd.f32 %v216, %v266
    %v268 = vpop.f32.mrb[0].mxu0
    %v269 = vpop.f32.mrb[0].mxu0
    %v270 = vpop.f32.mrb[0].mxu0
    %271 = vdwg.mxu0
    %vm272 = vcmask 23552
    %273 = vst.msk [vmem:[%s3] sm:$0xff] %vm272, %v267
    // Predicated region
    $region18: #{reverse_ae_dynamics.1} parent=1 // pred_check
      _
    $region19: #{reverse_ae_dynamics.1} parent=1 // pred_check_branch
      %275 = sbr.rel (0) target = $region21
    $region20: #{reverse_ae_dynamics.1} parent=1 // pred_region
      _
    $region21: #{reverse_ae_dynamics.1} parent=1 // pred_fallthru
      _
    // Predicated region
    $region22: #{reverse_ae_dynamics.1} parent=1 // pred_check
      _
    $region23: #{reverse_ae_dynamics.1} parent=1 // pred_check_branch
      %277 = sbr.rel (0) target = $region25
    $region24: #{reverse_ae_dynamics.1} parent=1 // pred_region
      _
    $region25: #{reverse_ae_dynamics.1} parent=1 // pred_fallthru
      _
    %278 = vsyncpa [#allocation3], 1

</llo_original>
